<compile_context>
chip_gen: v7x
topology: tpu7x:2x2x1
jax: 0.10.0
libtpu: 0.0.40
codegen_flags: <defaults>
</compile_context>

<pallas_src>
import functools
import math

import jax
import jax.numpy as jnp
from jax import lax
from jax.experimental import pallas as pl
from jax.experimental.pallas import tpu as pltpu

NUM_HEADS = 8                       # MultiHeadedAttention(8, hidden_size, dropout=0.1)
_MIB = 1024 * 1024
_CFG_CACHE = None


# --------------------------------------------------------------------------
# Generation-aware tiling configuration + padding helpers.
# --------------------------------------------------------------------------
def _cfg():
    """VMEM limit and tile targets, adapted to the local TPU generation."""
    global _CFG_CACHE
    if _CFG_CACHE is not None:
        return _CFG_CACHE
    vmem_cap = None
    try:
        info = pltpu.get_tpu_info()
        vmem_cap = getattr(info, "vmem_capacity_bytes", None)
    except Exception:
        vmem_cap = None
    if vmem_cap is None:
        vmem_cap = 64 * _MIB                       # conservative: assume v7x
    big = vmem_cap >= 100 * _MIB                   # v5e / v6e have 128 MiB
    _CFG_CACHE = {
        # leave >=16 MiB headroom for double buffers / compiler scratch:
        # ~48 MiB on v7x, ~100 MiB on v5e/v6e.
        "vmem_limit": int(max(32 * _MIB, min(vmem_cap - 16 * _MIB, 100 * _MIB))),
        "tm": 512 if big else 256,
        "tn": 512 if big else 256,
        "tk": 1024 if big else 512,
        "tl": 512 if big else 256,
        "tv": 1024 if big else 512,
    }
    return _CFG_CACHE


def _round_up(x, m):
    return ((x + m - 1) // m) * m


def _tile_pad(dim, target, align):
    """Return (tile, padded_dim).

    Small dims use a single full-dim block (always legal).  Large dims use an
    aligned tile and the dim is padded up to a tile multiple by the wrapper --
    never a giant full-dim fallback block (mandatory for v7x's 64 MiB VMEM)."""
    if dim <= target:
        return dim, dim
    t = max(align, (target // align) * align)
    return t, _round_up(dim, t)


def _m_align(compute_dtype):
    # bf16 packs 2 rows per sublane -> keep row tiles 16-aligned for bf16.
    return 16 if jnp.dtype(compute_dtype) == jnp.dtype(jnp.bfloat16) else 8


# --------------------------------------------------------------------------
# Kernel 1: tiled (x @ W + b) linear layer with K-reduction accumulator.
# --------------------------------------------------------------------------
def _linear_kernel(x_ref, w_ref, b_ref, o_ref, acc_ref):
    k = pl.program_id(2)
    prod = jnp.dot(x_ref[...], w_ref[...], preferred_element_type=jnp.float32)

    @pl.when(k == 0)
    def _():                         # direct assign: no zero-init VPU pass
        acc_ref[...] = prod

    @pl.when(k > 0)
    def _():
        acc_ref[...] += prod

    @pl.when(k == pl.num_programs(2) - 1)
    def _():
        o_ref[...] = (acc_ref[...] + b_ref[...]).astype(o_ref.dtype)


def linear_pallas(x, w, b=None, *, compute_dtype=jnp.bfloat16, out_dtype=None,
                  tm=None, tn=None, tk=None):
    """x: (..., K), w: (K, N), b: (N,)|None -> (..., N)."""
    cfg = _cfg()
    tm = cfg["tm"] if tm is None else tm
    tn = cfg["tn"] if tn is None else tn
    tk = cfg["tk"] if tk is None else tk
    if out_dtype is None:
        out_dtype = compute_dtype
    lead = x.shape[:-1]
    K = x.shape[-1]
    N = w.shape[1]
    x2 = x.reshape(-1, K).astype(compute_dtype)
    M = x2.shape[0]
    if b is None:
        b = jnp.zeros((N,), jnp.float32)
    b = b.astype(jnp.float32)

    tm, Mp = _tile_pad(M, tm, _m_align(compute_dtype))
    tn, Np = _tile_pad(N, tn, 128)
    tk, Kp = _tile_pad(K, tk, 128)
    if Mp != M:
        x2 = jnp.pad(x2, ((0, Mp - M), (0, 0)))
    if Kp != K:
        x2 = jnp.pad(x2, ((0, 0), (0, Kp - K)))
        w = jnp.pad(w, ((0, Kp - K), (0, 0)))
    if Np != N:
        w = jnp.pad(w, ((0, 0), (0, Np - N)))
        b = jnp.pad(b, (0, Np - N))
    b2 = b.reshape(1, Np)

    # TODO(synk): if profiling shows exposed DMA on the weight stream, sweep
    #             pipeline_mode=pl.Buffered(3) on the w BlockSpec.
    out = pl.pallas_call(
        _linear_kernel,
        out_shape=jax.ShapeDtypeStruct((Mp, Np), out_dtype),
        grid=(Mp // tm, Np // tn, Kp // tk),
        in_specs=[pl.BlockSpec((tm, tk), lambda i, j, k: (i, k)),
                  pl.BlockSpec((tk, tn), lambda i, j, k: (k, j)),
                  pl.BlockSpec((1, tn), lambda i, j, k: (0, j))],
        out_specs=pl.BlockSpec((tm, tn), lambda i, j, k: (i, j)),
        scratch_shapes=[pltpu.VMEM((tm, tn), jnp.float32)],
        compiler_params=pltpu.CompilerParams(
            dimension_semantics=("parallel", "parallel", "arbitrary"),
            vmem_limit_bytes=cfg["vmem_limit"]),
    )(x2, w.astype(compute_dtype), b2)
    if Mp != M or Np != N:
        out = out[:M, :N]
    return out.reshape(*lead, N)


# --------------------------------------------------------------------------
# Kernel 2: fused triple projection.  (MLP + lin folded into one weight,
# split into three input blocks so the [head|rel|tail] concat never exists.)
# --------------------------------------------------------------------------
def _triple_proj_kernel(h_ref, r_ref, t_ref, wh_ref, wr_ref, wt_ref, b_ref, o_ref):
    acc = jnp.dot(h_ref[...], wh_ref[...], preferred_element_type=jnp.float32)
    acc += jnp.dot(r_ref[...], wr_ref[...], preferred_element_type=jnp.float32)
    acc += jnp.dot(t_ref[...], wt_ref[...], preferred_element_type=jnp.float32)
    o_ref[...] = (acc + b_ref[...]).astype(o_ref.dtype)


def triple_proj_pallas(he, re_, te, w_fold, b_fold, *,
                       compute_dtype=jnp.bfloat16, tm=None, tn=None):
    cfg = _cfg()
    tm = cfg["tm"] if tm is None else tm
    tn = cfg["tn"] if tn is None else tn
    M, t = he.shape
    N = w_fold.shape[1]
    cdt = compute_dtype
    tm, Mp = _tile_pad(M, tm, _m_align(cdt))
    tn, Np = _tile_pad(N, tn, 128)

    def padm(a):
        return jnp.pad(a, ((0, Mp - M), (0, 0))) if Mp != M else a

    he = padm(he.astype(cdt))
    re_ = padm(re_.astype(cdt))
    te = padm(te.astype(cdt))
    wh, wr, wt = w_fold[:t], w_fold[t:2 * t], w_fold[2 * t:]
    bf = b_fold.astype(jnp.float32)
    if Np != N:
        wh = jnp.pad(wh, ((0, 0), (0, Np - N)))
        wr = jnp.pad(wr, ((0, 0), (0, Np - N)))
        wt = jnp.pad(wt, ((0, 0), (0, Np - N)))
        bf = jnp.pad(bf, (0, Np - N))
    b2 = bf.reshape(1, Np)

    out = pl.pallas_call(
        _triple_proj_kernel,
        out_shape=jax.ShapeDtypeStruct((Mp, Np), cdt),
        grid=(Mp // tm, Np // tn),
        in_specs=[pl.BlockSpec((tm, t), lambda i, j: (i, 0)),
                  pl.BlockSpec((tm, t), lambda i, j: (i, 0)),
                  pl.BlockSpec((tm, t), lambda i, j: (i, 0)),
                  pl.BlockSpec((t, tn), lambda i, j: (0, j)),
                  pl.BlockSpec((t, tn), lambda i, j: (0, j)),
                  pl.BlockSpec((t, tn), lambda i, j: (0, j)),
                  pl.BlockSpec((1, tn), lambda i, j: (0, j))],
        out_specs=pl.BlockSpec((tm, tn), lambda i, j: (i, j)),
        compiler_params=pltpu.CompilerParams(
            dimension_semantics=("parallel", "parallel"),
            vmem_limit_bytes=cfg["vmem_limit"]),
    )(he, re_, te, wh.astype(cdt), wr.astype(cdt), wt.astype(cdt), b2)
    if Mp != M or Np != N:
        out = out[:M, :N]
    return out


# --------------------------------------------------------------------------
# Kernel 3: 8-head knowledge attention ("knl"): query = decoder states,
#           key = value = triple embeddings.  Q/K/V projections are hoisted
#           to the wrapper (run once, not once per L tile); heads live on a
#           leading axis so there are no lane-crossing slices or masked
#           sub-dk ctx stores.  Returns (mid, head-mean attn).
# --------------------------------------------------------------------------
def _mha_knl_kernel(q_ref, k_ref, v_ref, wo_ref, bo_ref, mid_ref, attn_ref,
                    *, t_actual, t_padded):
    # q_ref: (1, NH, tl, dk)   k_ref/v_ref: (1, NH, Tp, dk)
    # wo_ref: (NH, dk, H)      bo_ref: (1, H)
    tl = q_ref.shape[2]
    Tp = k_ref.shape[2]
    H = wo_ref.shape[2]

    mid_acc = jnp.zeros((tl, H), jnp.float32)
    attn_sum = jnp.zeros((tl, Tp), jnp.float32)
    if t_actual < t_padded:      # static: mask padded key columns to -inf
        valid = lax.broadcasted_iota(jnp.int32, (tl, Tp), 1) < t_actual
    else:
        valid = None

    for h in range(NUM_HEADS):                                   # static unroll
        qh = q_ref[0, h]                                          # (tl, dk)
        kh = k_ref[0, h]                                          # (Tp, dk)
        vh = v_ref[0, h]                                          # (Tp, dk)
        s = lax.dot_general(qh, kh, (((1,), (1,)), ((), ())),
                            preferred_element_type=jnp.float32)   # (tl, Tp)
        if valid is not None:
            s = jnp.where(valid, s, -1e30)                        # padded -> exp()==0
        s = s - jnp.max(s, axis=-1, keepdims=True)
        e = jnp.exp(s)
        # divide -> EUP reciprocal + VPU multiply (frees VALU slots)
        p = e * pl.reciprocal(jnp.sum(e, axis=-1, keepdims=True), approx=True)
        attn_sum = attn_sum + p
        ctx = jnp.dot(p.astype(vh.dtype), vh,
                      preferred_element_type=jnp.float32)         # (tl, dk)
        # per-head output projection: mid += ctx_h @ Wo_h   (no ctx scratch)
        mid_acc = mid_acc + jnp.dot(ctx.astype(wo_ref.dtype), wo_ref[h],
                                    preferred_element_type=jnp.float32)

    mid_ref[0] = (mid_acc + bo_ref[...]).astype(mid_ref.dtype)
    attn_ref[0] = attn_sum * (1.0 / NUM_HEADS)                    # f32, lane-dense


def mha_knl_pallas(query, keyvalue, wq, bq, wk, bk, wv, bv, wo, bo, *,
                   compute_dtype=jnp.bfloat16, tl=None):
    cfg = _cfg()
    tl = cfg["tl"] if tl is None else tl
    B, L, H = query.shape
    T = keyvalue.shape[1]
    dk = H // NUM_HEADS
    cdt = compute_dtype
    scale = 1.0 / math.sqrt(dk)

    # --- hoisted projections (once per call, not once per L tile) ---------
    # 1/sqrt(dk) folded into Wq/bq -> no per-score-tile VPU multiply.
    q_proj = linear_pallas(query, wq * scale, bq * scale, compute_dtype=cdt)
    # K/V fused into one kv @ [Wk|Wv] matmul; T padded to a lane-dense
    # multiple of 128 (padded keys masked to -inf in-kernel => attn cols == 0).
    Tp = _round_up(T, 128)
    kv_in = keyvalue if Tp == T else jnp.pad(keyvalue, ((0, 0), (0, Tp - T), (0, 0)))
    wkv = jnp.concatenate([wk, wv], axis=1)
    bkv = jnp.concatenate([bk, bv])
    kv_proj = linear_pallas(kv_in, wkv, bkv, compute_dtype=cdt)   # (B, Tp, 2H)

    # --- head-major layout (wrapper-side layout plumbing) ------------------
    qh = q_proj.reshape(B, L, NUM_HEADS, dk).transpose(0, 2, 1, 3)
    kh = kv_proj[:, :, :H].reshape(B, Tp, NUM_HEADS, dk).transpose(0, 2, 1, 3)
    vh = kv_proj[:, :, H:].reshape(B, Tp, NUM_HEADS, dk).transpose(0, 2, 1, 3)
    wo_h = wo.reshape(NUM_HEADS, dk, H)

    tl, Lp = _tile_pad(L, tl, _m_align(cdt))
    if Lp != L:
        qh = jnp.pad(qh, ((0, 0), (0, 0), (0, Lp - L), (0, 0)))

    kernel = functools.partial(_mha_knl_kernel, t_actual=T, t_padded=Tp)
    # NOTE(v7x): for decode shapes (B small, L <= tl) this grid degenerates to
    # ~1 parallel step per axis and one TC may idle; acceptable at demo sizes.
    mid, attn = pl.pallas_call(
        kernel,
        out_shape=(jax.ShapeDtypeStruct((B, Lp, H), cdt),
                   jax.ShapeDtypeStruct((B, Lp, Tp), jnp.float32)),
        grid=(B, Lp // tl),
        in_specs=[pl.BlockSpec((1, NUM_HEADS, tl, dk), lambda b, l: (b, 0, l, 0)),
                  pl.BlockSpec((1, NUM_HEADS, Tp, dk), lambda b, l: (b, 0, 0, 0)),
                  pl.BlockSpec((1, NUM_HEADS, Tp, dk), lambda b, l: (b, 0, 0, 0)),
                  pl.BlockSpec((NUM_HEADS, dk, H), lambda b, l: (0, 0, 0)),
                  pl.BlockSpec((1, H), lambda b, l: (0, 0))],
        out_specs=(pl.BlockSpec((1, tl, H), lambda b, l: (b, l, 0)),
                   pl.BlockSpec((1, tl, Tp), lambda b, l: (b, l, 0))),
        compiler_params=pltpu.CompilerParams(
            dimension_semantics=("parallel", "parallel"),
            vmem_limit_bytes=cfg["vmem_limit"]),
    )(qh.astype(cdt), kh.astype(cdt), vh.astype(cdt), wo_h.astype(cdt),
      bo.reshape(1, H).astype(jnp.float32))
    if Lp != L:
        mid = mid[:, :L]
        attn = attn[:, :L]
    return mid, attn          # attn: (B, L, Tp) f32, padded columns exactly 0


# --------------------------------------------------------------------------
# Kernel 4: vocab-tiled pointer head.  Grid is (vocab, batch) so each (H, tv)
#           W_vocab tile stays VMEM-resident across the batch; p_gen / p_con
#           are precomputed per (B, L) in the wrapper (mid never re-fetched).
#           scatter_add(dim=2, index, src) == src @ one_hot(index) per tile.
# --------------------------------------------------------------------------
def _pointer_combine_kernel(outh_ref, dlg_ref, attn_ref, ids_ref, tail_ref,
                            wvoc_ref, pgen_ref, pcon_ref, o_ref):
    outh = outh_ref[0]                   # (L, H)
    dlg = dlg_ref[0]                     # (L, S)
    attn = attn_ref[0]                   # (L, Tp) f32
    ids = ids_ref[0]                     # (S, 1) int32
    tail = tail_ref[0]                   # (Tp, 1) int32
    p_gen = pgen_ref[0]                  # (L, 1) f32
    p_con = pcon_ref[0]                  # (L, 1) f32
    TV = o_ref.shape[-1]
    S = ids.shape[0]
    Tp = tail.shape[0]
    v0 = pl.program_id(0) * TV           # vocab offset of this tile

    # out = self.linear(out)  -- one (H, TV) weight tile per vocab grid step
    logits = jnp.dot(outh, wvoc_ref[...], preferred_element_type=jnp.float32)

    vid_s = v0 + lax.broadcasted_iota(jnp.int32, (S, TV), 1)
    vid_t = v0 + lax.broadcasted_iota(jnp.int32, (Tp, TV), 1)
    oh_src = (ids == vid_s).astype(dlg.dtype)
    oh_tail = (tail == vid_t).astype(dlg.dtype)
    copy_logits = jnp.dot(dlg, oh_src, preferred_element_type=jnp.float32)
    kbt_logits = jnp.dot(attn.astype(dlg.dtype), oh_tail,
                         preferred_element_type=jnp.float32)

    con_logits = p_gen * logits + (1.0 - p_gen) * copy_logits
    o_ref[0] = (p_con * kbt_logits + (1.0 - p_con) * con_logits).astype(o_ref.dtype)


def pointer_combine_pallas(out_h, dlg_attn, attn, input_ids, tail_ids, w_vocab,
                           p_gen, p_con, *, compute_dtype=jnp.bfloat16,
                           out_dtype=jnp.float32, tv=None):
    cfg = _cfg()
    tv = cfg["tv"] if tv is None else tv
    B, L, H = out_h.shape
    S = dlg_attn.shape[2]
    Tp = attn.shape[2]                   # already lane-padded by the MHA wrapper
    V = w_vocab.shape[1]
    cdt = compute_dtype

    tv, Vp = _tile_pad(V, tv, 128)
    wv = w_vocab if Vp == V else jnp.pad(w_vocab, ((0, 0), (0, Vp - V)))
    T0 = tail_ids.shape[1]
    tail_p = tail_ids if Tp == T0 else jnp.pad(tail_ids, ((0, 0), (0, Tp - T0)))
    ids3 = input_ids.astype(jnp.int32).reshape(B, S, 1)
    tail3 = tail_p.astype(jnp.int32).reshape(B, Tp, 1)

    out = pl.pallas_call(
        _pointer_combine_kernel,
        # NOTE: out_dtype=jnp.bfloat16 halves the dominant (B, L, V) writeback
        #       if the consumer tolerates it; default stays f32 (PyTorch parity).
        out_shape=jax.ShapeDtypeStruct((B, L, Vp), out_dtype),
        grid=(Vp // tv, B),              # vocab outer, batch inner -> W_vocab resident
        in_specs=[pl.BlockSpec((1, L, H), lambda v, b: (b, 0, 0)),
                  pl.BlockSpec((1, L, S), lambda v, b: (b, 0, 0)),
                  pl.BlockSpec((1, L, Tp), lambda v, b: (b, 0, 0)),
                  pl.BlockSpec((1, S, 1), lambda v, b: (b, 0, 0)),
                  pl.BlockSpec((1, Tp, 1), lambda v, b: (b, 0, 0)),
                  pl.BlockSpec((H, tv), lambda v, b: (0, v)),
                  pl.BlockSpec((1, L, 1), lambda v, b: (b, 0, 0)),
                  pl.BlockSpec((1, L, 1), lambda v, b: (b, 0, 0))],
        out_specs=pl.BlockSpec((1, L, tv), lambda v, b: (b, 0, v)),
        compiler_params=pltpu.CompilerParams(
            dimension_semantics=("parallel", "parallel"),
            vmem_limit_bytes=cfg["vmem_limit"]),
    )(out_h.astype(cdt), dlg_attn.astype(cdt), attn, ids3, tail3,
      wv.astype(cdt), p_gen.astype(jnp.float32), p_con.astype(jnp.float32))
    if Vp != V:
        out = out[:, :, :V]
    return out


# --------------------------------------------------------------------------
# Pointer.forward (glue in plain JAX, hot paths in the Pallas kernels above).
# --------------------------------------------------------------------------
def pointer_forward(params, input_ids, kg_enc_input, cross_attn_1, last_hidden,
                    *, compute_dtype=jnp.bfloat16, logits_dtype=jnp.float32):
    B, G1, G2, _ = kg_enc_input.shape
    head = kg_enc_input[..., 0]
    rel = kg_enc_input[..., 1]
    tail = kg_enc_input[..., 2]
    T = G1 * G2

    # embedding gathers stay in XLA (data-dependent gather)
    head_emb = jnp.take(params["emb_entity"], head, axis=0)
    rel_emb = jnp.take(params["emb_rel"], rel, axis=0)
    tail_emb = jnp.take(params["emb_entity"], tail, axis=0)
    t_embed = head_emb.shape[-1]

    # fold MLP (Linear + bias) and lin (Linear, no bias; the PyTorch source has
    # no nonlinearity between them) into a single projection; one-time f32 prep.
    w_fold = params["mlp_w"] @ params["lin_w"]          # (3t, H)
    b_fold = params["mlp_b"] @ params["lin_w"]          # (H,)
    triple_emb = triple_proj_pallas(
        head_emb.reshape(B * T, t_embed), rel_emb.reshape(B * T, t_embed),
        tail_emb.reshape(B * T, t_embed), w_fold, b_fold,
        compute_dtype=compute_dtype).reshape(B, T, -1)   # (B, T, H)

    dlg_attn = jnp.mean(cross_attn_1, axis=1)            # (B, L, S)
    out_h = linear_pallas(last_hidden, params["li_w"],
                          compute_dtype=compute_dtype)   # (B, L, H)

    mid, attn = mha_knl_pallas(out_h, triple_emb,
                               params["wq"], params["bq"],
                               params["wk"], params["bk"],
                               params["wv"], params["bv"],
                               params["wo"], params["bo"],
                               compute_dtype=compute_dtype)

    # gate rewrite enabling vocab tiling:
    #   p_gen = sigmoid((out_h @ Wv) @ g + b) = sigmoid(out_h @ (Wv @ g) + b)
    # p_gen / p_con depend only on (B, L) -> computed ONCE here (tiny XLA
    # reductions), not per vocab tile; mid is not re-streamed by the combiner.
    wg_eff = params["linear_w"] @ params["gate_w"]        # (H,)
    p_gen = jax.nn.sigmoid(
        jnp.einsum("blh,h->bl", out_h.astype(jnp.float32), wg_eff)[..., None]
        + params["gate_b"].reshape(1, 1, 1))
    p_con = jax.nn.sigmoid(
        jnp.einsum("blh,h->bl", mid.astype(jnp.float32),
                   params["copy_w"])[..., None]
        + params["copy_b"].reshape(1, 1, 1))

    return pointer_combine_pallas(out_h, dlg_attn, attn, input_ids,
                                  tail.reshape(B, T), params["linear_w"],
                                  p_gen, p_con,
                                  compute_dtype=compute_dtype,
                                  out_dtype=logits_dtype)


# --------------------------------------------------------------------------
# Pure-JAX reference (for correctness check only).
# --------------------------------------------------------------------------
def pointer_reference(params, input_ids, kg, cross_attn_1, last_hidden):
    B, G1, G2, _ = kg.shape
    head, rel, tail = kg[..., 0], kg[..., 1], kg[..., 2]
    he = params["emb_entity"][head]
    re_ = params["emb_rel"][rel]
    te = params["emb_entity"][tail]
    cat = jnp.concatenate([he, re_, te], axis=-1)
    triple = cat @ params["mlp_w"] + params["mlp_b"]
    T = G1 * G2
    triple = triple.reshape(B, T, -1) @ params["lin_w"]
    dlg = jnp.mean(cross_attn_1, axis=1)
    outh = last_hidden @ params["li_w"]
    H = outh.shape[-1]
    L = outh.shape[1]
    dk = H // NUM_HEADS
    Q = outh @ params["wq"] + params["bq"]
    K = triple @ params["wk"] + params["bk"]
    V = triple @ params["wv"] + params["bv"]

    def split(x):
        return x.reshape(B, -1, NUM_HEADS, dk).transpose(0, 2, 1, 3)

    Qh, Kh, Vh = split(Q), split(K), split(V)
    scores = jnp.einsum("bhld,bhtd->bhlt", Qh, Kh) / jnp.sqrt(jnp.float32(dk))
    p = jax.nn.softmax(scores, axis=-1)
    ctx = jnp.einsum("bhlt,bhtd->bhld", p, Vh).transpose(0, 2, 1, 3).reshape(B, L, H)
    mid = ctx @ params["wo"] + params["bo"]
    attn = jnp.mean(p, axis=1)

    logits = outh @ params["linear_w"]
    Vsz = logits.shape[-1]
    oh_src = jax.nn.one_hot(input_ids, Vsz, dtype=jnp.float32)
    copy_logits = jnp.einsum("bls,bsv->blv", dlg, oh_src)
    tail_flat = tail.reshape(B, T)
    oh_tail = jax.nn.one_hot(tail_flat, Vsz, dtype=jnp.float32)
    kbt_logits = jnp.einsum("blt,btv->blv", attn, oh_tail)
    p_gen = jax.nn.sigmoid(logits @ params["gate_w"].reshape(-1, 1) + params["gate_b"])
    p_con = jax.nn.sigmoid(mid @ params["copy_w"].reshape(-1, 1) + params["copy_b"])
    con = p_gen * logits + (1.0 - p_gen) * copy_logits
    return p_con * kbt_logits + (1.0 - p_con) * con


if __name__ == "__main__":
    # small but consistent shapes
    B, G1, G2 = 2, 2, 4          # kg_enc_input: (B, G1, G2, 3), T = G1*G2 = 8 triples
    H = 32                       # hidden_size (divisible by 8 heads)
    VOCAB = 128                  # vocab_size == entity_vocab == word_size
    RVOCAB = 16                  # relation_vocab
    TEMB = 16                    # t_embed (embedding dim)
    L = 8                        # decoder max_len
    S = 8                        # encoder src_len (input_ids length)
    DEC_HEADS = 4                # heads of out.cross_attentions[1]

    key = jax.random.PRNGKey(0)
    ks = list(jax.random.split(key, 24))

    def nrm(k, shape, scale=0.1):
        return scale * jax.random.normal(k, shape, dtype=jnp.float32)

    params = {
        "emb_entity": nrm(ks[0], (VOCAB, TEMB), 0.5),
        "emb_rel":    nrm(ks[1], (RVOCAB, TEMB), 0.5),
        "mlp_w":      nrm(ks[2], (3 * TEMB, 3 * TEMB)),
        "mlp_b":      nrm(ks[3], (3 * TEMB,)),
        "lin_w":      nrm(ks[4], (3 * TEMB, H)),
        "li_w":       nrm(ks[5], (2 * H, H)),
        "linear_w":   nrm(ks[6], (H, VOCAB)),
        "gate_w":     nrm(ks[7], (VOCAB,)),
        "gate_b":     nrm(ks[8], (1, 1)),
        "copy_w":     nrm(ks[9], (H,)),
        "copy_b":     nrm(ks[10], (1, 1)),
        "wq": nrm(ks[11], (H, H)), "bq": nrm(ks[12], (H,)),
        "wk": nrm(ks[13], (H, H)), "bk": nrm(ks[14], (H,)),
        "wv": nrm(ks[15], (H, H)), "bv": nrm(ks[16], (H,)),
        "wo": nrm(ks[17], (H, H)), "bo": nrm(ks[18], (H,)),
    }

    input_ids = jax.random.randint(ks[19], (B, S), 0, VOCAB, dtype=jnp.int32)
    kg_enc_input = jnp.stack(
        [jax.random.randint(ks[20], (B, G1, G2), 0, VOCAB, dtype=jnp.int32),
         jax.random.randint(ks[21], (B, G1, G2), 0, RVOCAB, dtype=jnp.int32),
         jax.random.randint(ks[22], (B, G1, G2), 0, VOCAB, dtype=jnp.int32)],
        axis=-1)                                           # (B, G1, G2, 3)
    # stand-ins for HuggingFace `out.cross_attentions[1]` and `out.last_hidden_state`
    cross_attn_1 = jax.random.uniform(ks[23], (B, DEC_HEADS, L, S), jnp.float32)
    last_hidden = jax.random.normal(jax.random.PRNGKey(1), (B, L, 2 * H), jnp.float32)

    # optimized bf16-compute path (production configuration)
    kb_bf16 = pointer_forward(params, input_ids, kg_enc_input,
                              cross_attn_1, last_hidden,
                              compute_dtype=jnp.bfloat16)
    kb_bf16 = jax.block_until_ready(kb_bf16)
    assert kb_bf16.shape == (B, L, VOCAB) and kb_bf16.dtype == jnp.float32

    # same kernels in f32 compute mode (tight correctness check)
    kb_f32 = pointer_forward(params, input_ids, kg_enc_input,
                             cross_attn_1, last_hidden,
                             compute_dtype=jnp.float32)
    kb_f32 = jax.block_until_ready(kb_f32)
    assert kb_f32.shape == (B, L, VOCAB) and kb_f32.dtype == jnp.float32

    ref = pointer_reference(params, input_ids, kg_enc_input,
                            cross_attn_1, last_hidden)
    assert jnp.allclose(kb_f32, ref, atol=2e-2, rtol=2e-2)
    assert jnp.allclose(kb_bf16, ref, atol=6e-2, rtol=6e-2)

    print("KERNEL_OK")
</pallas_src>

<mosaic_0001>
module attributes {stable_mosaic.version = 11 : i64} {
  func.func @_triple_proj_kernel(%arg0: i32, %arg1: i32, %arg2: memref<16x16xbf16, #tpu.memory_space<vmem>>, %arg3: memref<16x16xbf16, #tpu.memory_space<vmem>>, %arg4: memref<16x16xbf16, #tpu.memory_space<vmem>>, %arg5: memref<16x32xbf16, #tpu.memory_space<vmem>>, %arg6: memref<16x32xbf16, #tpu.memory_space<vmem>>, %arg7: memref<16x32xbf16, #tpu.memory_space<vmem>>, %arg8: memref<1x32xf32, #tpu.memory_space<vmem>>, %arg9: memref<16x32xbf16, #tpu.memory_space<vmem>>) attributes {dimension_semantics = [#tpu.dimension_semantics<parallel>, #tpu.dimension_semantics<parallel>], iteration_bounds = array<i64: 1, 1>, scalar_prefetch = 0 : i64, scratch_operands = 0 : i64, tpu.core_type = #tpu.core_type<tc>, window_params = [{transform_indices = @transform_0, window_bounds = array<i64: 16, 16>}, {transform_indices = @transform_1, window_bounds = array<i64: 16, 16>}, {transform_indices = @transform_2, window_bounds = array<i64: 16, 16>}, {transform_indices = @transform_3, window_bounds = array<i64: 16, 32>}, {transform_indices = @transform_4, window_bounds = array<i64: 16, 32>}, {transform_indices = @transform_5, window_bounds = array<i64: 16, 32>}, {transform_indices = @transform_6, window_bounds = array<i64: 1, 32>}, {transform_indices = @transform_7, window_bounds = array<i64: 16, 32>}]} {
    %c0 = arith.constant 0 : index
    %c0_0 = arith.constant 0 : index
    %0 = vector.load %arg2[%c0, %c0_0] : memref<16x16xbf16, #tpu.memory_space<vmem>>, vector<16x16xbf16>
    %c0_1 = arith.constant 0 : index
    %c0_2 = arith.constant 0 : index
    %1 = vector.load %arg5[%c0_1, %c0_2] : memref<16x32xbf16, #tpu.memory_space<vmem>>, vector<16x32xbf16>
    %cst = arith.constant dense<0.000000e+00> : vector<16x32xf32>
    %2 = tpu.matmul %0, %1, %cst {dimension_numbers = #tpu.dot_dimension_numbers<[1], [0], [0], [1], [0, 0, 1, 1], [], []>} : vector<16x16xbf16>, vector<16x32xbf16>, vector<16x32xf32> -> vector<16x32xf32>
    %c0_3 = arith.constant 0 : index
    %c0_4 = arith.constant 0 : index
    %3 = vector.load %arg3[%c0_3, %c0_4] : memref<16x16xbf16, #tpu.memory_space<vmem>>, vector<16x16xbf16>
    %c0_5 = arith.constant 0 : index
    %c0_6 = arith.constant 0 : index
    %4 = vector.load %arg6[%c0_5, %c0_6] : memref<16x32xbf16, #tpu.memory_space<vmem>>, vector<16x32xbf16>
    %cst_7 = arith.constant dense<0.000000e+00> : vector<16x32xf32>
    %5 = tpu.matmul %3, %4, %cst_7 {dimension_numbers = #tpu.dot_dimension_numbers<[1], [0], [0], [1], [0, 0, 1, 1], [], []>} : vector<16x16xbf16>, vector<16x32xbf16>, vector<16x32xf32> -> vector<16x32xf32>
    %6 = arith.addf %2, %5 : vector<16x32xf32>
    %c0_8 = arith.constant 0 : index
    %c0_9 = arith.constant 0 : index
    %7 = vector.load %arg4[%c0_8, %c0_9] : memref<16x16xbf16, #tpu.memory_space<vmem>>, vector<16x16xbf16>
    %c0_10 = arith.constant 0 : index
    %c0_11 = arith.constant 0 : index
    %8 = vector.load %arg7[%c0_10, %c0_11] : memref<16x32xbf16, #tpu.memory_space<vmem>>, vector<16x32xbf16>
    %cst_12 = arith.constant dense<0.000000e+00> : vector<16x32xf32>
    %9 = tpu.matmul %7, %8, %cst_12 {dimension_numbers = #tpu.dot_dimension_numbers<[1], [0], [0], [1], [0, 0, 1, 1], [], []>} : vector<16x16xbf16>, vector<16x32xbf16>, vector<16x32xf32> -> vector<16x32xf32>
    %10 = arith.addf %6, %9 : vector<16x32xf32>
    %c0_13 = arith.constant 0 : index
    %c0_14 = arith.constant 0 : index
    %11 = vector.load %arg8[%c0_13, %c0_14] : memref<1x32xf32, #tpu.memory_space<vmem>>, vector<1x32xf32>
    %12 = vector.broadcast %11 : vector<1x32xf32> to vector<16x32xf32>
    %13 = arith.addf %10, %12 : vector<16x32xf32>
    %14 = arith.truncf %13 : vector<16x32xf32> to vector<16x32xbf16>
    %c0_15 = arith.constant 0 : index
    %c0_16 = arith.constant 0 : index
    %15 = vector.load %arg9[%c0_15, %c0_16] : memref<16x32xbf16, #tpu.memory_space<vmem>>, vector<16x32xbf16>
    tpu.vector_store %arg9[%c0_15, %c0_16], %14 {strides = array<i32>} : memref<16x32xbf16, #tpu.memory_space<vmem>>, vector<16x32xbf16>,
    return
  }
  func.func @transform_0(%arg0: i32, %arg1: i32) -> (i32, i32) {
    %c0_i32 = arith.constant 0 : i32
    %c0_i32_0 = arith.constant 0 : i32
    return %arg0, %c0_i32 : i32, i32
  }
  func.func @transform_1(%arg0: i32, %arg1: i32) -> (i32, i32) {
    %c0_i32 = arith.constant 0 : i32
    %c0_i32_0 = arith.constant 0 : i32
    return %arg0, %c0_i32 : i32, i32
  }
  func.func @transform_2(%arg0: i32, %arg1: i32) -> (i32, i32) {
    %c0_i32 = arith.constant 0 : i32
    %c0_i32_0 = arith.constant 0 : i32
    return %arg0, %c0_i32 : i32, i32
  }
  func.func @transform_3(%arg0: i32, %arg1: i32) -> (i32, i32) {
    %c0_i32 = arith.constant 0 : i32
    %c0_i32_0 = arith.constant 0 : i32
    return %c0_i32, %arg1 : i32, i32
  }
  func.func @transform_4(%arg0: i32, %arg1: i32) -> (i32, i32) {
    %c0_i32 = arith.constant 0 : i32
    %c0_i32_0 = arith.constant 0 : i32
    return %c0_i32, %arg1 : i32, i32
  }
  func.func @transform_5(%arg0: i32, %arg1: i32) -> (i32, i32) {
    %c0_i32 = arith.constant 0 : i32
    %c0_i32_0 = arith.constant 0 : i32
    return %c0_i32, %arg1 : i32, i32
  }
  func.func @transform_6(%arg0: i32, %arg1: i32) -> (i32, i32) {
    %c0_i32 = arith.constant 0 : i32
    %c0_i32_0 = arith.constant 0 : i32
    return %c0_i32, %arg1 : i32, i32
  }
  func.func @transform_7(%arg0: i32, %arg1: i32) -> (i32, i32) {
    %c0_i32 = arith.constant 0 : i32
    return %arg0, %arg1 : i32, i32
  }
}

</mosaic_0001>

<llo_original>
// kernel: tpu_custom_call.1
$region0: #{tpu_custom_call.1}
  #allocation0 [shape = 'u32[]', space=smem, size = 0x4, offset = 0x4, fixed_abs, tag = 'smem constant byte address 0x4 - core index']
  #allocation1 [shape = 'u32[144,128]{1,0:T(1,128)}', space=vmem, size = 0x12000, scoped, tag = 'internal scratch']
  %s0 = inlined_call_operand.hbm [shape: bf16[16,16], index: 0, kind: input, shape index: {}]
  %s1 = inlined_call_operand.hbm [shape: bf16[16,16], index: 1, kind: input, shape index: {}]
  %s2 = inlined_call_operand.hbm [shape: bf16[16,16], index: 2, kind: input, shape index: {}]
  %s3 = inlined_call_operand.vmem [shape: bf16[16,32], index: 3, kind: input, shape index: {}]
  %s4 = inlined_call_operand.hbm [shape: bf16[16,32], index: 4, kind: input, shape index: {}]
  %s5 = inlined_call_operand.vmem [shape: bf16[16,32], index: 5, kind: input, shape index: {}]
  %s6 = inlined_call_operand.vmem [shape: f32[1,32], index: 6, kind: input, shape index: {}]
  %s7 = inlined_call_operand.hbm [shape: bf16[16,32], index: 7, kind: output, shape index: {}]
  %s8 = sld [smem:[#allocation0]]
  $region54: #{tpu_custom_call.1} parent=0
    _
  %s10 = ssub.s32 1, %s8
  %s11 = scalar_select 0, %s10, %s8
  $region1: #{tpu_custom_call.1} parent=0
    #allocation2 [shape = 'u8[4096]{0}', space=vmem, size = 0x1000, scoped, tag = 'input window, operand 0, single buffered']
    #allocation3 [shape = 's32[1]{0}', space=sflag, size = 0x4, scoped, tag = 'scoped memory for tpu_custom_call.1']
    #allocation4 [shape = 's32[1]{0}', space=sflag, size = 0x4, scoped, tag = 'scoped memory for tpu_custom_call.1']
    #allocation5 [shape = 'u8[4096]{0}', space=vmem, size = 0x1000, scoped, tag = 'input window, operand 1, single buffered']
    #allocation6 [shape = 's32[1]{0}', space=sflag, size = 0x4, scoped, tag = 'scoped memory for tpu_custom_call.1']
    #allocation7 [shape = 'u8[4096]{0}', space=vmem, size = 0x1000, scoped, tag = 'input window, operand 2, single buffered']
    #allocation8 [shape = 'u8[4096]{0}', space=vmem, size = 0x1000, scoped, tag = 'input window, operand 4, single buffered']
    #allocation9 [shape = 's32[1]{0}', space=sflag, size = 0x4, scoped, tag = 'scoped memory for tpu_custom_call.1']
    #allocation10 [shape = 'u8[4096]{0}', space=vmem, size = 0x1000, scoped, tag = 'output window, operand 0, single buffered']
    %12 = vsyncpa [#allocation3], 0
    %13 = vsyncpa [#allocation6], 0
    %14 = vsyncpa [#allocation9], 0
    %15 = vsyncpa [#allocation4], 0
    // Predicated region
    $region2: #{tpu_custom_call.1} parent=1 // pred_check
      _
    $region3: #{tpu_custom_call.1} parent=1 // pred_check_branch
      %17 = sbr.rel (0) target = $region5
    $region4: #{tpu_custom_call.1} parent=1 // pred_region
      %s19 = ssub.s32 128, 128
      %20 = vsyncadd [#allocation3], %s19
      %s21 = sshll.u32 [#allocation2], 4
      %s22 = int_to_ptr.vmem [resolvable:$true] %s21
      %27 = dma.hbm_to_vmem [thread:$0]  %s0, 128, %s22, [#allocation3], 64, 64, 4
    $region5: #{tpu_custom_call.1} parent=1 // pred_fallthru
      _
    // Predicated region
    $region6: #{tpu_custom_call.1} parent=1 // pred_check
      _
    $region7: #{tpu_custom_call.1} parent=1 // pred_check_branch
      %29 = sbr.rel (0) target = $region9
    $region8: #{tpu_custom_call.1} parent=1 // pred_region
      %s31 = ssub.s32 128, 128
      %32 = vsyncadd [#allocation6], %s31
      %s33 = sshll.u32 [#allocation5], 4
      %s34 = int_to_ptr.vmem [resolvable:$true] %s33
      %39 = dma.hbm_to_vmem [thread:$0]  %s1, 128, %s34, [#allocation6], 64, 64, 4
    $region9: #{tpu_custom_call.1} parent=1 // pred_fallthru
      _
    // Predicated region
    $region10: #{tpu_custom_call.1} parent=1 // pred_check
      _
    $region11: #{tpu_custom_call.1} parent=1 // pred_check_branch
      %41 = sbr.rel (0) target = $region13
    $region12: #{tpu_custom_call.1} parent=1 // pred_region
      %s43 = ssub.s32 128, 128
      %44 = vsyncadd [#allocation6], %s43
      %s45 = sshll.u32 [#allocation7], 4
      %s46 = int_to_ptr.vmem [resolvable:$true] %s45
      %51 = dma.hbm_to_vmem [thread:$0]  %s2, 128, %s46, [#allocation6], 64, 64, 4
    $region13: #{tpu_custom_call.1} parent=1 // pred_fallthru
      _
    // Predicated region
    $region14: #{tpu_custom_call.1} parent=1 // pred_check
      _
    $region15: #{tpu_custom_call.1} parent=1 // pred_check_branch
      %53 = sbr.rel (0) target = $region17
    $region16: #{tpu_custom_call.1} parent=1 // pred_region
      _
    $region17: #{tpu_custom_call.1} parent=1 // pred_fallthru
      _
    // Predicated region
    $region18: #{tpu_custom_call.1} parent=1 // pred_check
      _
    $region19: #{tpu_custom_call.1} parent=1 // pred_check_branch
      %55 = sbr.rel (0) target = $region21
    $region20: #{tpu_custom_call.1} parent=1 // pred_region
      %s57 = ssub.s32 128, 128
      %58 = vsyncadd [#allocation9], %s57
      %s59 = sshll.u32 [#allocation8], 4
      %s60 = int_to_ptr.vmem [resolvable:$true] %s59
      %65 = dma.hbm_to_vmem [thread:$0]  %s4, 128, %s60, [#allocation9], 64, 64, 4
    $region21: #{tpu_custom_call.1} parent=1 // pred_fallthru
      _
    // Predicated region
    $region22: #{tpu_custom_call.1} parent=1 // pred_check
      _
    $region23: #{tpu_custom_call.1} parent=1 // pred_check_branch
      %67 = sbr.rel (0) target = $region25
    $region24: #{tpu_custom_call.1} parent=1 // pred_region
      _
    $region25: #{tpu_custom_call.1} parent=1 // pred_fallthru
      _
    // Predicated region
    $region26: #{tpu_custom_call.1} parent=1 // pred_check
      _
    $region27: #{tpu_custom_call.1} parent=1 // pred_check_branch
      %69 = sbr.rel (0) target = $region29
    $region28: #{tpu_custom_call.1} parent=1 // pred_region
      _
    $region29: #{tpu_custom_call.1} parent=1 // pred_fallthru
      _
    // Predicated region
    $region30: #{tpu_custom_call.1} parent=1 // pred_check
      _
    $region31: #{tpu_custom_call.1} parent=1 // pred_check_branch
      %71 = sbr.rel (0) target = $region33
    $region32: #{tpu_custom_call.1} parent=1 // pred_region
      %72 = dma.done [#allocation3], 128
    $region33: #{tpu_custom_call.1} parent=1 // pred_fallthru
      _
    // Predicated region
    $region34: #{tpu_custom_call.1} parent=1 // pred_check
      _
    $region35: #{tpu_custom_call.1} parent=1 // pred_check_branch
      %74 = sbr.rel (0) target = $region37
    $region36: #{tpu_custom_call.1} parent=1 // pred_region
      %75 = dma.done [#allocation6], 128
    $region37: #{tpu_custom_call.1} parent=1 // pred_fallthru
      _
    // Predicated region
    $region38: #{tpu_custom_call.1} parent=1 // pred_check
      _
    $region39: #{tpu_custom_call.1} parent=1 // pred_check_branch
      %77 = sbr.rel (0) target = $region41
    $region40: #{tpu_custom_call.1} parent=1 // pred_region
      %78 = dma.done [#allocation6], 128
    $region41: #{tpu_custom_call.1} parent=1 // pred_fallthru
      _
    // Predicated region
    $region42: #{tpu_custom_call.1} parent=1 // pred_check
      _
    $region43: #{tpu_custom_call.1} parent=1 // pred_check_branch
      %80 = sbr.rel (0) target = $region45
    $region44: #{tpu_custom_call.1} parent=1 // pred_region
      %81 = dma.done [#allocation9], 128
    $region45: #{tpu_custom_call.1} parent=1 // pred_fallthru
      _
    %v83 = vld [vmem:[#allocation2] sm:$0xf]
    %v84 = vld [vmem:[#allocation2 + $0x4] sm:$0xf]
    %v85 = vld [vmem:[%s3] sm:$0xf]
    %v86 = vld [vmem:[%s3 + $0x4] sm:$0xf]
    %v87 = vld [vmem:[#allocation5] sm:$0xf]
    %v88 = vld [vmem:[#allocation5 + $0x4] sm:$0xf]
    %v89 = vld [vmem:[#allocation8] sm:$0xf]
    %v90 = vld [vmem:[#allocation8 + $0x4] sm:$0xf]
    %v93 = vunpack.c.l.b16 %v87
    %v94 = vunpack.c.l.b16 %v88
    %v95 = vpack.c.b16 %v94, %v93
    %v98 = vunpack.c.l.b16 %v89
    %v99 = vunpack.c.l.b16 %v90
    %v100 = vpack.c.b16 %v99, %v98
    %vm102 = vcmask 130048
    %v104 = vsel %vm102, %v95, 0
    %106 = vmatprep.subr.bf16.mxu0 0
    %107 = vmatpush1.bf16.msra.mxu0 %v100
    %108 = vmatprep.subr.bf16.mxu0 0
    %109 = vmatpush1.bf16.msra.mxu0 0
    %110 = vmatprep.subr.bf16.mxu0 0
    %111 = vmatpush1.bf16.msra.mxu0 0
    %112 = vmatprep.subr.bf16.mxu0 0
    %113 = vmatpush1.bf16.msra.mxu0 0
    %114 = vmatprep.subr.bf16.mxu0 0
    %115 = vmatpush1.bf16.msra.mxu0 0
    %116 = vmatprep.subr.bf16.mxu0 0
    %117 = vmatpush1.bf16.msra.mxu0 0
    %118 = vmatprep.subr.bf16.mxu0 0
    %119 = vmatpush1.bf16.msra.mxu0 0
    %120 = vmatprep.subr.bf16.mxu0 0
    %121 = vmatpush1.bf16.msra.mxu0 0
    %122 = vmatprep.subr.bf16.mxu0 0
    %123 = vmatpush1.bf16.msra.mxu0 0
    %124 = vmatprep.subr.bf16.mxu0 0
    %125 = vmatpush1.bf16.msra.mxu0 0
    %126 = vmatprep.subr.bf16.mxu0 0
    %127 = vmatpush1.bf16.msra.mxu0 0
    %128 = vmatprep.subr.bf16.mxu0 0
    %129 = vmatpush1.bf16.msra.mxu0 0
    %130 = vmatprep.subr.bf16.mxu0 0
    %131 = vmatpush1.bf16.msra.mxu0 0
    %132 = vmatprep.subr.bf16.mxu0 0
    %133 = vmatpush1.bf16.msra.mxu0 0
    %134 = vmatprep.subr.bf16.mxu0 0
    %135 = vmatpush1.bf16.msra.mxu0 0
    %136 = vmatprep.subr.bf16.mxu0 0
    %137 = vmatpush1.bf16.msra.mxu0 0
    %138 = vmatprep.mubr.bf16.mxu0 0
    %139 = vmatmul.mubr.bf16.gmra.mrb[0].mxu0 %v104
    %v140 = vpop.f32.mrb[0].mxu0
    %v141 = vadd.f32 0.0, %v140
    %v142 = vpop.f32.mrb[0].mxu0
    %v143 = vpop.f32.mrb[0].mxu0
    %v144 = vadd.f32 0.0, %v143
    %v145 = vpop.f32.mrb[0].mxu0
    %146 = vdwg.mxu0
    %v149 = vunpack.c.l.b16 %v83
    %v150 = vunpack.c.l.b16 %v84
    %v151 = vpack.c.b16 %v150, %v149
    %v154 = vunpack.c.l.b16 %v85
    %v155 = vunpack.c.l.b16 %v86
    %v156 = vpack.c.b16 %v155, %v154
    %v159 = vsel %vm102, %v151, 0
    %161 = vmatprep.subr.bf16.mxu0 0
    %162 = vmatpush1.bf16.msra.mxu0 %v156
    %163 = vmatprep.subr.bf16.mxu0 0
    %164 = vmatpush1.bf16.msra.mxu0 0
    %165 = vmatprep.subr.bf16.mxu0 0
    %166 = vmatpush1.bf16.msra.mxu0 0
    %167 = vmatprep.subr.bf16.mxu0 0
    %168 = vmatpush1.bf16.msra.mxu0 0
    %169 = vmatprep.subr.bf16.mxu0 0
    %170 = vmatpush1.bf16.msra.mxu0 0
    %171 = vmatprep.subr.bf16.mxu0 0
    %172 = vmatpush1.bf16.msra.mxu0 0
    %173 = vmatprep.subr.bf16.mxu0 0
    %174 = vmatpush1.bf16.msra.mxu0 0
    %175 = vmatprep.subr.bf16.mxu0 0
    %176 = vmatpush1.bf16.msra.mxu0 0
    %177 = vmatprep.subr.bf16.mxu0 0
    %178 = vmatpush1.bf16.msra.mxu0 0
    %179 = vmatprep.subr.bf16.mxu0 0
    %180 = vmatpush1.bf16.msra.mxu0 0
    %181 = vmatprep.subr.bf16.mxu0 0
    %182 = vmatpush1.bf16.msra.mxu0 0
    %183 = vmatprep.subr.bf16.mxu0 0
    %184 = vmatpush1.bf16.msra.mxu0 0
    %185 = vmatprep.subr.bf16.mxu0 0
    %186 = vmatpush1.bf16.msra.mxu0 0
    %187 = vmatprep.subr.bf16.mxu0 0
    %188 = vmatpush1.bf16.msra.mxu0 0
    %189 = vmatprep.subr.bf16.mxu0 0
    %190 = vmatpush1.bf16.msra.mxu0 0
    %191 = vmatprep.subr.bf16.mxu0 0
    %192 = vmatpush1.bf16.msra.mxu0 0
    %193 = vmatprep.mubr.bf16.mxu0 0
    %194 = vmatmul.mubr.bf16.gmra.mrb[0].mxu0 %v159
    %v195 = vpop.f32.mrb[0].mxu0
    %v196 = vadd.f32 %v141, %v195
    %v197 = vpop.f32.mrb[0].mxu0
    %v198 = vpop.f32.mrb[0].mxu0
    %v199 = vadd.f32 %v144, %v198
    %v200 = vpop.f32.mrb[0].mxu0
    %201 = vdwg.mxu0
    %v202 = vld [vmem:[#allocation7] sm:$0xf]
    %v203 = vld [vmem:[#allocation7 + $0x4] sm:$0xf]
    %v204 = vld [vmem:[%s5] sm:$0xf]
    %v205 = vld [vmem:[%s5 + $0x4] sm:$0xf]
    %v208 = vunpack.c.l.b16 %v202
    %v209 = vunpack.c.l.b16 %v203
    %v210 = vpack.c.b16 %v209, %v208
    %v213 = vunpack.c.l.b16 %v204
    %v214 = vunpack.c.l.b16 %v205
    %v215 = vpack.c.b16 %v214, %v213
    %v218 = vsel %vm102, %v210, 0
    %220 = vmatprep.subr.bf16.mxu0 0
    %221 = vmatpush1.bf16.msra.mxu0 %v215
    %222 = vmatprep.subr.bf16.mxu0 0
    %223 = vmatpush1.bf16.msra.mxu0 0
    %224 = vmatprep.subr.bf16.mxu0 0
    %225 = vmatpush1.bf16.msra.mxu0 0
    %226 = vmatprep.subr.bf16.mxu0 0
    %227 = vmatpush1.bf16.msra.mxu0 0
    %228 = vmatprep.subr.bf16.mxu0 0
    %229 = vmatpush1.bf16.msra.mxu0 0
    %230 = vmatprep.subr.bf16.mxu0 0
    %231 = vmatpush1.bf16.msra.mxu0 0
    %232 = vmatprep.subr.bf16.mxu0 0
    %233 = vmatpush1.bf16.msra.mxu0 0
    %234 = vmatprep.subr.bf16.mxu0 0
    %235 = vmatpush1.bf16.msra.mxu0 0
    %236 = vmatprep.subr.bf16.mxu0 0
    %237 = vmatpush1.bf16.msra.mxu0 0
    %238 = vmatprep.subr.bf16.mxu0 0
    %239 = vmatpush1.bf16.msra.mxu0 0
    %240 = vmatprep.subr.bf16.mxu0 0
    %241 = vmatpush1.bf16.msra.mxu0 0
    %242 = vmatprep.subr.bf16.mxu0 0
    %243 = vmatpush1.bf16.msra.mxu0 0
    %244 = vmatprep.subr.bf16.mxu0 0
    %245 = vmatpush1.bf16.msra.mxu0 0
    %246 = vmatprep.subr.bf16.mxu0 0
    %247 = vmatpush1.bf16.msra.mxu0 0
    %248 = vmatprep.subr.bf16.mxu0 0
    %249 = vmatpush1.bf16.msra.mxu0 0
    %250 = vmatprep.subr.bf16.mxu0 0
    %251 = vmatpush1.bf16.msra.mxu0 0
    %252 = vmatprep.mubr.bf16.mxu0 0
    %253 = vmatmul.mubr.bf16.gmra.mrb[0].mxu0 %v218
    %v254 = vpop.f32.mrb[0].mxu0
    %v255 = vadd.f32 0.0, %v254
    %v256 = vpop.f32.mrb[0].mxu0
    %v257 = vpop.f32.mrb[0].mxu0
    %v258 = vadd.f32 0.0, %v257
    %v259 = vpop.f32.mrb[0].mxu0
    %260 = vdwg.mxu0
    %v261 = vadd.f32 %v196, %v255
    %v262 = vadd.f32 %v199, %v258
    %v263 = vld [vmem:[%s6] sm:$0x1]
    %v265 = vlaneseq
    %v266 = vshrl.u32 %v265, 7
    %v267 = vsub.s32 0, %v266
    %v268 = vrot.slane %v263, %v267
    %v270 = vadd.f32 %v261, %v268
    %v271 = vadd.f32 %v262, %v268
    %v272 = vpack.c.bf16 %v271, %v270
    %v274 = vunpack.c.l.b16 %v272
    %v275 = vunpack.c.h.b16 %v272
    %v276 = vpack.c.b16 %v274, %v274
    %v277 = vpack.c.b16 %v275, %v275
    %vm280 = vcmask 257024
    %281 = vst.msk [vmem:[#allocation10] sm:$0xf] %vm280, %v276
    %282 = vst.msk [vmem:[#allocation10 + $0x4] sm:$0xf] %vm280, %v277
    // Predicated region
    $region46: #{tpu_custom_call.1} parent=1 // pred_check
      _
    $region47: #{tpu_custom_call.1} parent=1 // pred_check_branch
      %284 = sbr.rel (0) target = $region49
    $region48: #{tpu_custom_call.1} parent=1 // pred_region
      %s286 = ssub.s32 128, 128
      %287 = vsyncadd [#allocation4], %s286
      %s288 = sshll.u32 [#allocation10], 4
      %s289 = int_to_ptr.vmem [resolvable:$true] %s288
      %294 = dma.vmem_to_hbm [thread:$0]  %s289, 128, %s7, [#allocation4], 64, 64, 4
    $region49: #{tpu_custom_call.1} parent=1 // pred_fallthru
      _
    // Predicated region
    $region50: #{tpu_custom_call.1} parent=1 // pred_check
      _
    $region51: #{tpu_custom_call.1} parent=1 // pred_check_branch
      %296 = sbr.rel (0) target = $region53
    $region52: #{tpu_custom_call.1} parent=1 // pred_region
      %297 = dma.done [#allocation4], 128
    $region53: #{tpu_custom_call.1} parent=1 // pred_fallthru
      _
    %298 = vsyncpa [#allocation3], 1
    %299 = vsyncpa [#allocation6], 1
    %300 = vsyncpa [#allocation9], 1
    %301 = vsyncpa [#allocation4], 1

</llo_original>
